<compile_context>
chip_gen: v7x
topology: tpu7x:2x2x1
jax: 0.10.0
libtpu: 0.0.40
codegen_flags: <defaults>
</compile_context>

<pallas_src>
import functools

import jax
import jax.numpy as jnp
from jax import lax
from jax.experimental import pallas as pl
from jax.experimental.pallas import tpu as pltpu


# ---------------------------------------------------------------------------
# Kernel 1: folded RepVggDW token mixer (single depthwise kxk conv + bias).
# ---------------------------------------------------------------------------
def _make_token_mixer_kernel(k: int, h: int, w: int):
    def kernel(xp_ref, w_ref, b_ref, o_ref):
        # xp_ref: (1, C, H+2p, W+2p) bf16  (spatially zero-padded input)
        # w_ref : (k*k, C, 1, 1)     f32   (folded depthwise taps)
        # b_ref : (C, 1, 1)          f32   (folded bias)
        # o_ref : (1, C, H, W)       bf16
        xp = xp_ref[...].astype(jnp.float32)
        acc = jnp.zeros(o_ref.shape, jnp.float32)
        # k*k statically-shifted FMAs on the VPU (no MXU, no gather).
        for i in range(k):
            for j in range(k):
                tap = xp[:, :, i:i + h, j:j + w]            # (1, C, H, W)
                acc = acc + w_ref[i * k + j] * tap          # (C,1,1) broadcasts
        acc = acc + b_ref[...]
        # NOTE: output kept in the 4-D NCHW block (W=16 lanes) to keep the halo
        # conv a simple static-slice kernel; the heavy per-token path (kernel 2)
        # is fully lane-dense.
        o_ref[...] = acc.astype(o_ref.dtype)

    return kernel


@jax.jit
def token_mixer_pallas(x, w_taps, b_col):
    """Folded RepVggDW (use_se=False, eval BN).  x: (N, C, H, W) bf16."""
    n, c, h, w = x.shape
    kk = w_taps.shape[0]
    k = int(round(kk ** 0.5))
    p = k // 2
    xp = jnp.pad(x, ((0, 0), (0, 0), (p, p), (p, p)))  # conv halo only
    return pl.pallas_call(
        _make_token_mixer_kernel(k, h, w),
        out_shape=jax.ShapeDtypeStruct((n, c, h, w), x.dtype),
        grid_spec=pltpu.PrefetchScalarGridSpec(
            num_scalar_prefetch=0,
            grid=(n,),
            in_specs=[
                pl.BlockSpec((1, c, h + 2 * p, w + 2 * p), lambda b: (b, 0, 0, 0)),
                pl.BlockSpec((kk, c, 1, 1), lambda b: (0, 0, 0, 0)),
                pl.BlockSpec((c, 1, 1), lambda b: (0, 0, 0)),
            ],
            out_specs=pl.BlockSpec((1, c, h, w), lambda b: (b, 0, 0, 0)),
        ),
        compiler_params=pltpu.CompilerParams(dimension_semantics=("parallel",)),
    )(xp, w_taps, b_col)


# ---------------------------------------------------------------------------
# Kernel 2: fused RepVitMLP (1x1 conv+BN -> GELU -> 1x1 conv+BN) + residual.
# Lane-dense: spatial tokens in the last (lane) axis; channels in sublanes.
# ---------------------------------------------------------------------------
def _make_channel_mixer_kernel(c_in: int, hidden: int):
    def kernel(x_ref, w1_ref, b1_ref, w2_ref, b2_ref, o_ref):
        # x_ref : (BT, C, TL) bf16   (token-mixer output == RepViTBlock identity)
        # w1_ref: (C, HIDDEN, 1) f32 ; b1_ref: (HIDDEN, 1) f32   (conv1+BN folded)
        # w2_ref: (HIDDEN, C, 1) f32 ; b2_ref: (C, 1)      f32   (conv2+BN folded)
        # o_ref : (BT, C, TL) bf16   (identity + channel_mixer(identity))
        x = x_ref[...].astype(jnp.float32)
        bt, _, tl = x.shape

        # conv1 (1x1) + folded BN: K=C contraction as unrolled VPU broadcast-FMAs
        # (far too small for the MXU).
        h = jnp.broadcast_to(b1_ref[...], (bt, hidden, tl))
        for c in range(c_in):
            h = h + w1_ref[c] * x[:, c:c + 1, :]            # (HIDDEN,1)*(BT,1,TL)

        # exact GELU (PyTorch nn.GELU default, approximate='none'), f32 math.
        g = 0.5 * h * (1.0 + lax.erf(h * jnp.float32(0.7071067811865476)))

        # conv2 (1x1) + folded BN: K=HIDDEN contraction, unrolled on the VPU.
        y = jnp.broadcast_to(b2_ref[...], (bt, c_in, tl))
        for hc in range(hidden):
            y = y + w2_ref[hc] * g[:, hc:hc + 1, :]         # (C,1)*(BT,1,TL)

        # RepViTBlock outer residual fused in.
        o_ref[...] = (x + y).astype(o_ref.dtype)

    return kernel


def _pick_lane_tile(hw: int, max_tokens: int) -> int:
    """Largest lane tile dividing H*W (full rows if small, else a multiple of 128
    dividing H*W).  Guarantees no token-axis padding copy."""
    if hw <= max_tokens:
        return hw
    for t in range(max_tokens - max_tokens % 128, 0, -128):
        if hw % t == 0:
            return t
    return hw  # fallback: full rows (block == full dim is always legal)


def _pick_batch_tile(n: int, tl: int, max_tokens: int) -> int:
    """Merge batch images per block up to ~max_tokens tokens/step, but keep >=2
    grid steps when possible so the parallel axes can shard across TensorCores
    (v7x megacore)."""
    bt = max(1, min(n, max_tokens // max(tl, 1)))
    while bt > 1 and (n % bt != 0 or n // bt < 2):
        bt -= 1
    if n % bt != 0:
        bt = 1
    return bt


@functools.partial(jax.jit, static_argnames=("max_tokens",))
def channel_mixer_residual_pallas(t, w1_cols, b1_col, w2_cols, b2_col, *,
                                  max_tokens=2048):
    """Fused RepVitMLP + outer residual.  t: (N, C, H, W) bf16 (token-mixer out)."""
    n, c, h, w = t.shape
    hw = h * w
    hidden = w1_cols.shape[1]

    # NCHW -> (N, C, H*W) is a free reshape (contiguous trailing dims): spatial
    # tokens land in the 128-wide lane axis; no transposes, no padding.
    t_tok = t.reshape(n, c, hw)

    tl = _pick_lane_tile(hw, max_tokens)
    bt = _pick_batch_tile(n, tl, max_tokens)

    out_tok = pl.pallas_call(
        _make_channel_mixer_kernel(c, hidden),
        out_shape=jax.ShapeDtypeStruct((n, c, hw), t.dtype),
        grid_spec=pltpu.PrefetchScalarGridSpec(
            num_scalar_prefetch=0,
            grid=(n // bt, hw // tl),
            in_specs=[
                pl.BlockSpec((bt, c, tl), lambda b, s: (b, 0, s)),
                pl.BlockSpec((c, hidden, 1), lambda b, s: (0, 0, 0)),
                pl.BlockSpec((hidden, 1), lambda b, s: (0, 0)),
                pl.BlockSpec((hidden, c, 1), lambda b, s: (0, 0, 0)),
                pl.BlockSpec((c, 1), lambda b, s: (0, 0)),
            ],
            out_specs=pl.BlockSpec((bt, c, tl), lambda b, s: (b, 0, s)),
        ),
        compiler_params=pltpu.CompilerParams(
            dimension_semantics=("parallel", "parallel")),
    )(t_tok, w1_cols, b1_col, w2_cols, b2_col)
    return out_tok.reshape(n, c, h, w)


def repvit_block(x, dw_w_taps, dw_b_col, w1_cols, b1_col, w2_cols, b2_col):
    """Full RepViTBlock forward (eval-folded BN, use_se=False).
    Activations cross HBM as bf16; all in-kernel math is f32."""
    x_bf16 = x.astype(jnp.bfloat16)
    identity = token_mixer_pallas(x_bf16, dw_w_taps, dw_b_col)
    return channel_mixer_residual_pallas(identity, w1_cols, b1_col, w2_cols, b2_col)


# ---------------------------------------------------------------------------
# Plain-JAX glue: BN folding (same math as the module's reparameterize()).
# ---------------------------------------------------------------------------
def fold_conv_bn_1x1(conv_w, gamma, beta, mean, var, eps=1e-5):
    """Fold BatchNorm2d (running stats) into a bias-free 1x1 conv."""
    scale = gamma / jnp.sqrt(var + eps)
    w_eff = conv_w[:, :, 0, 0] * scale[:, None]     # (out, in)
    b_eff = beta - mean * scale
    return w_eff, b_eff


def fold_token_mixer(dw_w, bn1_g, bn1_b, bn1_m, bn1_v,
                     c1x1_w, c1x1_b, bn2_g, bn2_b, bn2_m, bn2_v, eps=1e-5):
    """RepVggDW.reparameterize() math (eval BN):
    bn2(dwconv_bn1(x) + dw1x1(x) + x) -> one depthwise kxk conv with bias."""
    s1 = bn1_g / jnp.sqrt(bn1_v + eps)
    w = dw_w * s1[:, None, None, None]
    b = bn1_b - bn1_m * s1
    ctr = dw_w.shape[-1] // 2
    w = w.at[:, :, ctr, ctr].add(c1x1_w[:, :, 0, 0] + 1.0)   # + 1x1 conv + identity
    b = b + c1x1_b
    s2 = bn2_g / jnp.sqrt(bn2_v + eps)
    w = w * s2[:, None, None, None]
    b = bn2_b + (b - bn2_m) * s2
    return w, b                                              # (C,1,k,k), (C,)


if __name__ == "__main__":
    # Small shapes consistent with the module: NCHW input, in_dim=4, hidden=32.
    N, C, H, W = 2, 4, 16, 16
    HIDDEN = 32      # = in_dim * mlp_ratio (mlp_ratio = 8)
    K = 3            # token-mixer depthwise kernel size
    P = K // 2
    EPS = 1e-5

    key = jax.random.PRNGKey(0)
    ks = jax.random.split(key, 20)

    x = jax.random.normal(ks[0], (N, C, H, W), jnp.float32)

    # token mixer (RepVggDW, reparameterized=False, use_se=False, eval BN stats)
    dw_w = jax.random.normal(ks[1], (C, 1, K, K), jnp.float32) * 0.2
    tm_bn1_g = 1.0 + 0.1 * jax.random.normal(ks[2], (C,), jnp.float32)
    tm_bn1_b = 0.1 * jax.random.normal(ks[3], (C,), jnp.float32)
    tm_bn1_m = 0.1 * jax.random.normal(ks[4], (C,), jnp.float32)
    tm_bn1_v = jnp.abs(jax.random.normal(ks[5], (C,), jnp.float32)) + 0.5
    c1x1_w = jax.random.normal(ks[6], (C, 1, 1, 1), jnp.float32) * 0.2
    c1x1_b = 0.1 * jax.random.normal(ks[7], (C,), jnp.float32)
    tm_bn2_g = 1.0 + 0.1 * jax.random.normal(ks[8], (C,), jnp.float32)
    tm_bn2_b = 0.1 * jax.random.normal(ks[9], (C,), jnp.float32)
    tm_bn2_m = 0.1 * jax.random.normal(ks[10], (C,), jnp.float32)
    tm_bn2_v = jnp.abs(jax.random.normal(ks[11], (C,), jnp.float32)) + 0.5

    # channel mixer (RepVitMLP).  (The module inits conv2's bn weight to 0.0; we
    # use deterministic random BN params so the computation is non-trivial --
    # semantics are unchanged.)
    conv1_w = jax.random.normal(ks[12], (HIDDEN, C, 1, 1), jnp.float32) * 0.2
    m_bn1_g = 1.0 + 0.1 * jax.random.normal(ks[13], (HIDDEN,), jnp.float32)
    m_bn1_b = 0.1 * jax.random.normal(ks[14], (HIDDEN,), jnp.float32)
    m_bn1_m = 0.1 * jax.random.normal(ks[15], (HIDDEN,), jnp.float32)
    m_bn1_v = jnp.abs(jax.random.normal(ks[16], (HIDDEN,), jnp.float32)) + 0.5
    conv2_w = jax.random.normal(ks[17], (C, HIDDEN, 1, 1), jnp.float32) * 0.2
    m_bn2_g = 1.0 + 0.1 * jax.random.normal(ks[18], (C,), jnp.float32)
    m_bn2_b = 0.1 * jax.random.normal(ks[19], (C,), jnp.float32)
    m_bn2_m = jnp.zeros((C,), jnp.float32)
    m_bn2_v = jnp.ones((C,), jnp.float32)

    # --- fold BN into conv weights (plain-JAX glue) and reshape for the kernels
    tm_w, tm_b = fold_token_mixer(dw_w, tm_bn1_g, tm_bn1_b, tm_bn1_m, tm_bn1_v,
                                  c1x1_w, c1x1_b,
                                  tm_bn2_g, tm_bn2_b, tm_bn2_m, tm_bn2_v, EPS)
    dw_w_taps = tm_w.reshape(C, K * K).T.reshape(K * K, C, 1, 1)   # (k*k, C, 1, 1)
    dw_b_col = tm_b.reshape(C, 1, 1)

    w1_eff, b1_eff = fold_conv_bn_1x1(conv1_w, m_bn1_g, m_bn1_b, m_bn1_m, m_bn1_v, EPS)
    w2_eff, b2_eff = fold_conv_bn_1x1(conv2_w, m_bn2_g, m_bn2_b, m_bn2_m, m_bn2_v, EPS)
    w1_cols = jnp.transpose(w1_eff)[:, :, None]    # (C, HIDDEN, 1)
    b1_col = b1_eff[:, None]                       # (HIDDEN, 1)
    w2_cols = jnp.transpose(w2_eff)[:, :, None]    # (HIDDEN, C, 1)
    b2_col = b2_eff[:, None]                       # (C, 1)

    # --- run the Pallas kernels
    x_bf16 = x.astype(jnp.bfloat16)
    identity = token_mixer_pallas(x_bf16, dw_w_taps, dw_b_col)
    out = repvit_block(x, dw_w_taps, dw_b_col, w1_cols, b1_col, w2_cols, b2_col)
    out = jax.block_until_ready(out)
    assert out.shape == (N, C, H, W), out.shape
    assert out.dtype == jnp.bfloat16, out.dtype

    # --- pure-JAX references (eval-mode BN, mirroring the bf16 HBM boundaries)
    hi = jax.lax.Precision.HIGHEST

    def bn_eval(v, g, b, m, var):
        return ((v - m[None, :, None, None]) / jnp.sqrt(var + EPS)[None, :, None, None]
                * g[None, :, None, None] + b[None, :, None, None])

    def reference_token_mixer(xf):
        # RepVggDW.forward (reparameterized=False, use_se=False):
        #   bn(conv_bn(x) + conv1x1(x) + x)
        y = lax.conv_general_dilated(
            xf, dw_w, window_strides=(1, 1), padding=((P, P), (P, P)),
            dimension_numbers=("NCHW", "OIHW", "NCHW"),
            feature_group_count=C, precision=hi)
        y = bn_eval(y, tm_bn1_g, tm_bn1_b, tm_bn1_m, tm_bn1_v)
        y1 = xf * c1x1_w[:, 0, 0, 0][None, :, None, None] + c1x1_b[None, :, None, None]
        return bn_eval(y + y1 + xf, tm_bn2_g, tm_bn2_b, tm_bn2_m, tm_bn2_v)

    def reference_channel_mixer_residual(tf):
        # identity + conv2(gelu(conv1(identity)))   (BN folded, exact GELU)
        h = jnp.einsum("nchw,oc->nohw", tf, w1_eff, precision=hi) \
            + b1_eff[None, :, None, None]
        g = 0.5 * h * (1.0 + lax.erf(h / jnp.sqrt(2.0)))
        y = jnp.einsum("nohw,co->nchw", g, w2_eff, precision=hi) \
            + b2_eff[None, :, None, None]
        return tf + y

    # check 1: token-mixer kernel vs un-folded eval-mode math
    ref_tm = reference_token_mixer(x_bf16.astype(jnp.float32)).astype(jnp.bfloat16)
    err_tm = float(jnp.max(jnp.abs(identity.astype(jnp.float32)
                                   - ref_tm.astype(jnp.float32))))
    assert jnp.allclose(identity.astype(jnp.float32), ref_tm.astype(jnp.float32),
                        atol=2e-2, rtol=2e-2), err_tm

    # check 2: fused channel-mixer + residual kernel, fed the same bf16 identity
    ref_out = reference_channel_mixer_residual(
        identity.astype(jnp.float32)).astype(jnp.bfloat16)
    err_out = float(jnp.max(jnp.abs(out.astype(jnp.float32)
                                    - ref_out.astype(jnp.float32))))
    assert jnp.allclose(out.astype(jnp.float32), ref_out.astype(jnp.float32),
                        atol=2e-2, rtol=2e-2), err_out

    print("KERNEL_OK")
</pallas_src>

<mosaic_0001>
module attributes {stable_mosaic.version = 11 : i64} {
  func.func @kernel(%arg0: i32, %arg1: memref<1x4x18x18xbf16, #tpu.memory_space<vmem>>, %arg2: memref<9x4x1x1xf32, #tpu.memory_space<vmem>>, %arg3: memref<4x1x1xf32, #tpu.memory_space<vmem>>, %arg4: memref<1x4x16x16xbf16, #tpu.memory_space<vmem>>) attributes {dimension_semantics = [#tpu.dimension_semantics<parallel>], iteration_bounds = array<i64: 2>, scalar_prefetch = 0 : i64, scratch_operands = 0 : i64, tpu.core_type = #tpu.core_type<tc>, window_params = [{transform_indices = @transform_0, window_bounds = array<i64: 1, 4, 18, 18>}, {pipeline_mode = #tpu.pipeline_mode<synchronous>, transform_indices = @transform_1, window_bounds = array<i64: 9, 4, 1, 1>}, {pipeline_mode = #tpu.pipeline_mode<synchronous>, transform_indices = @transform_2, window_bounds = array<i64: 4, 1, 1>}, {transform_indices = @transform_3, window_bounds = array<i64: 1, 4, 16, 16>}]} {
    %c0 = arith.constant 0 : index
    %c0_0 = arith.constant 0 : index
    %c0_1 = arith.constant 0 : index
    %c0_2 = arith.constant 0 : index
    %0 = vector.load %arg1[%c0, %c0_0, %c0_1, %c0_2] : memref<1x4x18x18xbf16, #tpu.memory_space<vmem>>, vector<1x4x18x18xbf16>
    %1 = arith.extf %0 : vector<1x4x18x18xbf16> to vector<1x4x18x18xf32>
    %cst = arith.constant 0.000000e+00 : f32
    %2 = vector.broadcast %cst : f32 to vector<1x4x16x16xf32>
    %3 = vector.extract_strided_slice %1 {offsets = [0, 0, 0, 0], sizes = [1, 4, 16, 16], strides = [1, 1, 1, 1]} : vector<1x4x18x18xf32> to vector<1x4x16x16xf32>
    %c0_3 = arith.constant 0 : index
    %c0_4 = arith.constant 0 : index
    %c0_5 = arith.constant 0 : index
    %c0_6 = arith.constant 0 : index
    %4 = vector.load %arg2[%c0_3, %c0_4, %c0_5, %c0_6] : memref<9x4x1x1xf32, #tpu.memory_space<vmem>>, vector<1x4x1x1xf32>
    %5 = vector.shape_cast %4 : vector<1x4x1x1xf32> to vector<4x1x1xf32>
    %6 = vector.shape_cast %5 : vector<4x1x1xf32> to vector<1x4x1x1xf32>
    %7 = vector.broadcast %6 : vector<1x4x1x1xf32> to vector<1x4x16x16xf32>
    %8 = arith.mulf %7, %3 : vector<1x4x16x16xf32>
    %9 = arith.addf %2, %8 : vector<1x4x16x16xf32>
    %10 = vector.extract_strided_slice %1 {offsets = [0, 0, 0, 1], sizes = [1, 4, 16, 16], strides = [1, 1, 1, 1]} : vector<1x4x18x18xf32> to vector<1x4x16x16xf32>
    %c1 = arith.constant 1 : index
    %c0_7 = arith.constant 0 : index
    %c0_8 = arith.constant 0 : index
    %c0_9 = arith.constant 0 : index
    %11 = vector.load %arg2[%c1, %c0_7, %c0_8, %c0_9] : memref<9x4x1x1xf32, #tpu.memory_space<vmem>>, vector<1x4x1x1xf32>
    %12 = vector.shape_cast %11 : vector<1x4x1x1xf32> to vector<4x1x1xf32>
    %13 = vector.shape_cast %12 : vector<4x1x1xf32> to vector<1x4x1x1xf32>
    %14 = vector.broadcast %13 : vector<1x4x1x1xf32> to vector<1x4x16x16xf32>
    %15 = arith.mulf %14, %10 : vector<1x4x16x16xf32>
    %16 = arith.addf %9, %15 : vector<1x4x16x16xf32>
    %17 = vector.extract_strided_slice %1 {offsets = [0, 0, 0, 2], sizes = [1, 4, 16, 16], strides = [1, 1, 1, 1]} : vector<1x4x18x18xf32> to vector<1x4x16x16xf32>
    %c2 = arith.constant 2 : index
    %c0_10 = arith.constant 0 : index
    %c0_11 = arith.constant 0 : index
    %c0_12 = arith.constant 0 : index
    %18 = vector.load %arg2[%c2, %c0_10, %c0_11, %c0_12] : memref<9x4x1x1xf32, #tpu.memory_space<vmem>>, vector<1x4x1x1xf32>
    %19 = vector.shape_cast %18 : vector<1x4x1x1xf32> to vector<4x1x1xf32>
    %20 = vector.shape_cast %19 : vector<4x1x1xf32> to vector<1x4x1x1xf32>
    %21 = vector.broadcast %20 : vector<1x4x1x1xf32> to vector<1x4x16x16xf32>
    %22 = arith.mulf %21, %17 : vector<1x4x16x16xf32>
    %23 = arith.addf %16, %22 : vector<1x4x16x16xf32>
    %24 = vector.extract_strided_slice %1 {offsets = [0, 0, 1, 0], sizes = [1, 4, 16, 16], strides = [1, 1, 1, 1]} : vector<1x4x18x18xf32> to vector<1x4x16x16xf32>
    %c3 = arith.constant 3 : index
    %c0_13 = arith.constant 0 : index
    %c0_14 = arith.constant 0 : index
    %c0_15 = arith.constant 0 : index
    %25 = vector.load %arg2[%c3, %c0_13, %c0_14, %c0_15] : memref<9x4x1x1xf32, #tpu.memory_space<vmem>>, vector<1x4x1x1xf32>
    %26 = vector.shape_cast %25 : vector<1x4x1x1xf32> to vector<4x1x1xf32>
    %27 = vector.shape_cast %26 : vector<4x1x1xf32> to vector<1x4x1x1xf32>
    %28 = vector.broadcast %27 : vector<1x4x1x1xf32> to vector<1x4x16x16xf32>
    %29 = arith.mulf %28, %24 : vector<1x4x16x16xf32>
    %30 = arith.addf %23, %29 : vector<1x4x16x16xf32>
    %31 = vector.extract_strided_slice %1 {offsets = [0, 0, 1, 1], sizes = [1, 4, 16, 16], strides = [1, 1, 1, 1]} : vector<1x4x18x18xf32> to vector<1x4x16x16xf32>
    %c4 = arith.constant 4 : index
    %c0_16 = arith.constant 0 : index
    %c0_17 = arith.constant 0 : index
    %c0_18 = arith.constant 0 : index
    %32 = vector.load %arg2[%c4, %c0_16, %c0_17, %c0_18] : memref<9x4x1x1xf32, #tpu.memory_space<vmem>>, vector<1x4x1x1xf32>
    %33 = vector.shape_cast %32 : vector<1x4x1x1xf32> to vector<4x1x1xf32>
    %34 = vector.shape_cast %33 : vector<4x1x1xf32> to vector<1x4x1x1xf32>
    %35 = vector.broadcast %34 : vector<1x4x1x1xf32> to vector<1x4x16x16xf32>
    %36 = arith.mulf %35, %31 : vector<1x4x16x16xf32>
    %37 = arith.addf %30, %36 : vector<1x4x16x16xf32>
    %38 = vector.extract_strided_slice %1 {offsets = [0, 0, 1, 2], sizes = [1, 4, 16, 16], strides = [1, 1, 1, 1]} : vector<1x4x18x18xf32> to vector<1x4x16x16xf32>
    %c5 = arith.constant 5 : index
    %c0_19 = arith.constant 0 : index
    %c0_20 = arith.constant 0 : index
    %c0_21 = arith.constant 0 : index
    %39 = vector.load %arg2[%c5, %c0_19, %c0_20, %c0_21] : memref<9x4x1x1xf32, #tpu.memory_space<vmem>>, vector<1x4x1x1xf32>
    %40 = vector.shape_cast %39 : vector<1x4x1x1xf32> to vector<4x1x1xf32>
    %41 = vector.shape_cast %40 : vector<4x1x1xf32> to vector<1x4x1x1xf32>
    %42 = vector.broadcast %41 : vector<1x4x1x1xf32> to vector<1x4x16x16xf32>
    %43 = arith.mulf %42, %38 : vector<1x4x16x16xf32>
    %44 = arith.addf %37, %43 : vector<1x4x16x16xf32>
    %45 = vector.extract_strided_slice %1 {offsets = [0, 0, 2, 0], sizes = [1, 4, 16, 16], strides = [1, 1, 1, 1]} : vector<1x4x18x18xf32> to vector<1x4x16x16xf32>
    %c6 = arith.constant 6 : index
    %c0_22 = arith.constant 0 : index
    %c0_23 = arith.constant 0 : index
    %c0_24 = arith.constant 0 : index
    %46 = vector.load %arg2[%c6, %c0_22, %c0_23, %c0_24] : memref<9x4x1x1xf32, #tpu.memory_space<vmem>>, vector<1x4x1x1xf32>
    %47 = vector.shape_cast %46 : vector<1x4x1x1xf32> to vector<4x1x1xf32>
    %48 = vector.shape_cast %47 : vector<4x1x1xf32> to vector<1x4x1x1xf32>
    %49 = vector.broadcast %48 : vector<1x4x1x1xf32> to vector<1x4x16x16xf32>
    %50 = arith.mulf %49, %45 : vector<1x4x16x16xf32>
    %51 = arith.addf %44, %50 : vector<1x4x16x16xf32>
    %52 = vector.extract_strided_slice %1 {offsets = [0, 0, 2, 1], sizes = [1, 4, 16, 16], strides = [1, 1, 1, 1]} : vector<1x4x18x18xf32> to vector<1x4x16x16xf32>
    %c7 = arith.constant 7 : index
    %c0_25 = arith.constant 0 : index
    %c0_26 = arith.constant 0 : index
    %c0_27 = arith.constant 0 : index
    %53 = vector.load %arg2[%c7, %c0_25, %c0_26, %c0_27] : memref<9x4x1x1xf32, #tpu.memory_space<vmem>>, vector<1x4x1x1xf32>
    %54 = vector.shape_cast %53 : vector<1x4x1x1xf32> to vector<4x1x1xf32>
    %55 = vector.shape_cast %54 : vector<4x1x1xf32> to vector<1x4x1x1xf32>
    %56 = vector.broadcast %55 : vector<1x4x1x1xf32> to vector<1x4x16x16xf32>
    %57 = arith.mulf %56, %52 : vector<1x4x16x16xf32>
    %58 = arith.addf %51, %57 : vector<1x4x16x16xf32>
    %59 = vector.extract_strided_slice %1 {offsets = [0, 0, 2, 2], sizes = [1, 4, 16, 16], strides = [1, 1, 1, 1]} : vector<1x4x18x18xf32> to vector<1x4x16x16xf32>
    %c8 = arith.constant 8 : index
    %c0_28 = arith.constant 0 : index
    %c0_29 = arith.constant 0 : index
    %c0_30 = arith.constant 0 : index
    %60 = vector.load %arg2[%c8, %c0_28, %c0_29, %c0_30] : memref<9x4x1x1xf32, #tpu.memory_space<vmem>>, vector<1x4x1x1xf32>
    %61 = vector.shape_cast %60 : vector<1x4x1x1xf32> to vector<4x1x1xf32>
    %62 = vector.shape_cast %61 : vector<4x1x1xf32> to vector<1x4x1x1xf32>
    %63 = vector.broadcast %62 : vector<1x4x1x1xf32> to vector<1x4x16x16xf32>
    %64 = arith.mulf %63, %59 : vector<1x4x16x16xf32>
    %65 = arith.addf %58, %64 : vector<1x4x16x16xf32>
    %c0_31 = arith.constant 0 : index
    %c0_32 = arith.constant 0 : index
    %c0_33 = arith.constant 0 : index
    %66 = vector.load %arg3[%c0_31, %c0_32, %c0_33] : memref<4x1x1xf32, #tpu.memory_space<vmem>>, vector<4x1x1xf32>
    %67 = vector.shape_cast %66 : vector<4x1x1xf32> to vector<1x4x1x1xf32>
    %68 = vector.broadcast %67 : vector<1x4x1x1xf32> to vector<1x4x16x16xf32>
    %69 = arith.addf %65, %68 : vector<1x4x16x16xf32>
    %70 = arith.truncf %69 : vector<1x4x16x16xf32> to vector<1x4x16x16xbf16>
    %c0_34 = arith.constant 0 : index
    %c0_35 = arith.constant 0 : index
    %c0_36 = arith.constant 0 : index
    %c0_37 = arith.constant 0 : index
    %71 = vector.load %arg4[%c0_34, %c0_35, %c0_36, %c0_37] : memref<1x4x16x16xbf16, #tpu.memory_space<vmem>>, vector<1x4x16x16xbf16>
    tpu.vector_store %arg4[%c0_34, %c0_35, %c0_36, %c0_37], %70 {strides = array<i32>} : memref<1x4x16x16xbf16, #tpu.memory_space<vmem>>, vector<1x4x16x16xbf16>,
    return
  }
  func.func @transform_0(%arg0: i32) -> (i32, i32, i32, i32) {
    %c0_i32 = arith.constant 0 : i32
    %c0_i32_0 = arith.constant 0 : i32
    %c0_i32_1 = arith.constant 0 : i32
    %c0_i32_2 = arith.constant 0 : i32
    return %arg0, %c0_i32, %c0_i32_0, %c0_i32_1 : i32, i32, i32, i32
  }
  func.func @transform_1(%arg0: i32) -> (i32, i32, i32, i32) {
    %c0_i32 = arith.constant 0 : i32
    %c0_i32_0 = arith.constant 0 : i32
    %c0_i32_1 = arith.constant 0 : i32
    %c0_i32_2 = arith.constant 0 : i32
    %c0_i32_3 = arith.constant 0 : i32
    return %c0_i32, %c0_i32_0, %c0_i32_1, %c0_i32_2 : i32, i32, i32, i32
  }
  func.func @transform_2(%arg0: i32) -> (i32, i32, i32) {
    %c0_i32 = arith.constant 0 : i32
    %c0_i32_0 = arith.constant 0 : i32
    %c0_i32_1 = arith.constant 0 : i32
    %c0_i32_2 = arith.constant 0 : i32
    return %c0_i32, %c0_i32_0, %c0_i32_1 : i32, i32, i32
  }
  func.func @transform_3(%arg0: i32) -> (i32, i32, i32, i32) {
    %c0_i32 = arith.constant 0 : i32
    %c0_i32_0 = arith.constant 0 : i32
    %c0_i32_1 = arith.constant 0 : i32
    %c0_i32_2 = arith.constant 0 : i32
    return %arg0, %c0_i32, %c0_i32_0, %c0_i32_1 : i32, i32, i32, i32
  }
}

</mosaic_0001>

<llo_original>
// kernel: token_mixer_pallas.1
$region0: #{token_mixer_pallas.1}
  #allocation0 [shape = 'u32[]', space=smem, size = 0x4, offset = 0x4, fixed_abs, tag = 'smem constant byte address 0x4 - core index']
  #allocation1 [shape = 'u32[144,128]{1,0:T(1,128)}', space=vmem, size = 0x12000, scoped, tag = 'internal scratch']
  %s0 = inlined_call_operand.vmem [shape: bf16[2,4,18,18], index: 0, kind: input, shape index: {}]
  %s1 = inlined_call_operand.vmem [shape: f32[9,4,1,1], index: 1, kind: input, shape index: {}]
  %s2 = inlined_call_operand.vmem [shape: f32[4,1,1], index: 2, kind: input, shape index: {}]
  %s3 = inlined_call_operand.hbm [shape: bf16[2,4,16,16], index: 3, kind: output, shape index: {}]
  %s4 = sld [smem:[#allocation0]]
  $region45: #{token_mixer_pallas.1} parent=0
    _
  %s6 = ssub.s32 1, %s4
  %s7 = scalar_select 0, %s6, %s4
  $region1: #{token_mixer_pallas.1} parent=0
    #allocation2 [shape = 'u8[32768]{0}', space=vmem, size = 0x8000, scoped, tag = 'output window, operand 0']
    #allocation3 [shape = 's32[2]{0}', space=sflag, size = 0x8, scoped, tag = 'scoped memory for token_mixer_pallas.1']
    %8 = vsyncpa [#allocation3], 0
    %s9 = scalar_lea.sflag [#allocation3], 1
    %10 = vsyncpa %s9, 0
    loop: start=0, step=1, limit=4
    $region2: #{token_mixer_pallas.1} parent=1 // loop_pre_header
      _
    $region3: #{token_mixer_pallas.1} parent=1 // loop_header
      %s12 = sphi 0, %s16
      %p13 = scmp.ge.s32.totalorder %s12, 4
      %s22 = sphi 0, %s24
      %s25 = sphi 0, %s22
      %s26 = sphi 0, %s25
      %s42 = sphi 0, %s26
      %s46 = sphi 0, %s46
      %s48 = sphi 0, %s46
      %s49 = sphi 0, %s48
      %s63 = sphi 0, %s49
      %s67 = sphi 0, %s67
      %s69 = sphi 0, %s67
      %s70 = sphi 0, %s69
      %s84 = sphi 0, %s70
      %s90 = sphi 0, %s92
      %s93 = sphi 0, %s90
      %s94 = sphi 0, %s93
      %s110 = sphi 0, %s94
    $region4: #{token_mixer_pallas.1} parent=1 // loop_header_branch
      %15 = sbr.rel (%p13) target = $region8
    $region5: #{token_mixer_pallas.1} parent=1 // loop_body
      %s17 = ssub.s32 %s12, 1
      %s18 = ssub.s32 %s12, 2
      %s19 = sadd.s32 %s12, 1
      %s20 = ssub.s32 %s12, %s19
      %p21 = scmp.eq.s32.totalorder %s20, 0
      %s23 = sadd.s32 %s22, 1
      %s24 = scalar_select %p21, %s22, %s23
      %p27 = pneg %p21
      %p28 = scmp.eq.s32.totalorder %s12, 1
      %p29 = por %p27, %p28
      %p30 = scmp.ne.s32.totalorder %s22, %s25
      %p31 = scmp.eq.s32.totalorder %s12, 0
      %p32 = por %p30, %p31
      %p33 = scmp.ne.s32.totalorder %s22, %s25
      %p34 = scmp.eq.s32.totalorder %s17, 1
      %p35 = por %p33, %p34
      %p36 = scmp.ne.s32.totalorder %s25, %s26
      %p37 = scmp.eq.s32.totalorder %s17, 0
      %p38 = por %p36, %p37
      %p39 = scmp.ne.s32.totalorder %s25, %s26
      %p40 = scmp.eq.s32.totalorder %s18, 1
      %p41 = por %p39, %p40
      %p43 = scmp.ne.s32.totalorder %s26, %s42
      %p44 = scmp.eq.s32.totalorder %s18, 0
      %p45 = por %p43, %p44
      %s47 = sadd.s32 %s46, 1
      %p50 = scmp.eq.s32.totalorder %s12, 1
      %p51 = scmp.ne.s32.totalorder %s46, %s48
      %p52 = scmp.eq.s32.totalorder %s12, 0
      %p53 = por %p51, %p52
      %p54 = scmp.ne.s32.totalorder %s46, %s48
      %p55 = scmp.eq.s32.totalorder %s17, 1
      %p56 = por %p54, %p55
      %p57 = scmp.ne.s32.totalorder %s48, %s49
      %p58 = scmp.eq.s32.totalorder %s17, 0
      %p59 = por %p57, %p58
      %p60 = scmp.ne.s32.totalorder %s48, %s49
      %p61 = scmp.eq.s32.totalorder %s18, 1
      %p62 = por %p60, %p61
      %p64 = scmp.ne.s32.totalorder %s49, %s63
      %p65 = scmp.eq.s32.totalorder %s18, 0
      %p66 = por %p64, %p65
      %s68 = sadd.s32 %s67, 1
      %p71 = scmp.eq.s32.totalorder %s12, 1
      %p72 = scmp.ne.s32.totalorder %s67, %s69
      %p73 = scmp.eq.s32.totalorder %s12, 0
      %p74 = por %p72, %p73
      %p75 = scmp.ne.s32.totalorder %s67, %s69
      %p76 = scmp.eq.s32.totalorder %s17, 1
      %p77 = por %p75, %p76
      %p78 = scmp.ne.s32.totalorder %s69, %s70
      %p79 = scmp.eq.s32.totalorder %s17, 0
      %p80 = por %p78, %p79
      %p81 = scmp.ne.s32.totalorder %s69, %s70
      %p82 = scmp.eq.s32.totalorder %s18, 1
      %p83 = por %p81, %p82
      %p85 = scmp.ne.s32.totalorder %s70, %s84
      %p86 = scmp.eq.s32.totalorder %s18, 0
      %p87 = por %p85, %p86
      %s88 = ssub.s32 %s12, %s19
      %p89 = scmp.eq.s32.totalorder %s88, 0
      %s91 = sadd.s32 %s90, 1
      %s92 = scalar_select %p89, %s90, %s91
      %p95 = pneg %p89
      %p96 = scmp.eq.s32.totalorder %s12, 1
      %p97 = por %p95, %p96
      %p98 = scmp.ne.s32.totalorder %s90, %s93
      %p99 = scmp.eq.s32.totalorder %s12, 0
      %p100 = por %p98, %p99
      %p101 = scmp.ne.s32.totalorder %s90, %s93
      %p102 = scmp.eq.s32.totalorder %s17, 1
      %p103 = por %p101, %p102
      %p104 = scmp.ne.s32.totalorder %s93, %s94
      %p105 = scmp.eq.s32.totalorder %s17, 0
      %p106 = por %p104, %p105
      %p107 = scmp.ne.s32.totalorder %s93, %s94
      %p108 = scmp.eq.s32.totalorder %s18, 1
      %p109 = por %p107, %p108
      %p111 = scmp.ne.s32.totalorder %s94, %s110
      %p112 = scmp.eq.s32.totalorder %s18, 0
      %p113 = por %p111, %p112
      %p114 = scmp.le.s32.totalorder 1, %s12
      %p115 = scmp.lt.s32.totalorder %s12, 3
      %p116 = pnand %p114, %p115
      %p117 = pneg %p116
      // Predicated region
      $region9: #{token_mixer_pallas.1} parent=5 // pred_check
        _
      $region10: #{token_mixer_pallas.1} parent=5 // pred_check_branch
        %119 = sbr.rel (%p116) target = $region12
      $region11: #{token_mixer_pallas.1} parent=5 // pred_region
        %s120 = ssub.s32 %s12, 1
        // Predicated region
        $region13: #{token_mixer_pallas.1} parent=11 // pred_check
          %p121 = pneg %p59
        $region14: #{token_mixer_pallas.1} parent=11 // pred_check_branch
          %123 = sbr.rel (%p121) target = $region16
        $region15: #{token_mixer_pallas.1} parent=11 // pred_region
          _
        $region16: #{token_mixer_pallas.1} parent=11 // pred_fallthru
          _
        // Predicated region
        $region17: #{token_mixer_pallas.1} parent=11 // pred_check
          %p124 = pneg %p80
        $region18: #{token_mixer_pallas.1} parent=11 // pred_check_branch
          %126 = sbr.rel (%p124) target = $region20
        $region19: #{token_mixer_pallas.1} parent=11 // pred_region
          _
        $region20: #{token_mixer_pallas.1} parent=11 // pred_fallthru
          _
      $region12: #{token_mixer_pallas.1} parent=5 // pred_fallthru
        _
      %p127 = scmp.lt.s32.totalorder %s12, 2
      // Predicated region
      $region21: #{token_mixer_pallas.1} parent=5 // pred_check
        %p128 = pneg %p127
      $region22: #{token_mixer_pallas.1} parent=5 // pred_check_branch
        %130 = sbr.rel (%p128) target = $region24
      $region23: #{token_mixer_pallas.1} parent=5 // pred_region
        // Predicated region
        $region25: #{token_mixer_pallas.1} parent=23 // pred_check
          %p131 = pneg %p32
        $region26: #{token_mixer_pallas.1} parent=23 // pred_check_branch
          %133 = sbr.rel (%p131) target = $region28
        $region27: #{token_mixer_pallas.1} parent=23 // pred_region
          %p134 = scmp.lt.s32.totalorder %s12, 1
          %s135 = scalar_select %p134, %s12, 1
          %s136 = smul.addr %s135, 12
          %s137 = smul.addr %s136, 4
          %s138 = scalar_lea.vmem %s0, %s137
        $region28: #{token_mixer_pallas.1} parent=23 // pred_fallthru
          _
      $region24: #{token_mixer_pallas.1} parent=5 // pred_fallthru
        _
      %p139 = scmp.le.s32.totalorder 1, %s12
      %p140 = scmp.lt.s32.totalorder %s12, 3
      %p141 = pnand %p139, %p140
      %p142 = pneg %p141
      // Predicated region
      $region29: #{token_mixer_pallas.1} parent=5 // pred_check
        _
      $region30: #{token_mixer_pallas.1} parent=5 // pred_check_branch
        %144 = sbr.rel (%p141) target = $region32
      $region31: #{token_mixer_pallas.1} parent=5 // pred_region
        %s145 = ssub.s32 %s12, 1
        %p146 = scmp.lt.s32.totalorder %s17, 1
        %s147 = scalar_select %p146, %s17, 1
        %s148 = smul.addr %s147, 12
        %s149 = smul.addr %s148, 4
        %s150 = scalar_lea.vmem %s0, %s149
        %p151 = pneg %p38
        %p152 = pneg %p35
        %p153 = pneg %p59
        %p154 = pneg %p56
        %p155 = pneg %p80
        %p156 = pneg %p77
        %p157 = pneg %p106
        %p158 = pneg %p103
        %s159 = sand.u32 %s93, 1
        %s160 = scalar_lea.sflag [#allocation3], %s159
        %s161 = sand.u32 %s93, 1
        %s162 = smul.addr %s161, 32
        %s163 = scalar_lea.vmem [#allocation2], %s162
        %p164 = scmp.lt.s32.totalorder %s17, 1
        %s165 = scalar_select %p164, %s17, 1
        %s166 = smul.addr %s165, 12
        %s167 = smul.addr %s166, 4
        %s168 = scalar_lea.vmem %s0, %s167
        %v169 = vld [vmem:[%s168] sm:$0xf]
        %v170 = vld [vmem:[%s168 + $0x4] sm:$0xf]
        %v171 = vld [vmem:[%s168 + $0x8] sm:$0x1]
        %v172 = vld [vmem:[%s168 + $0xc] sm:$0xf]
        %v173 = vld [vmem:[%s168 + $0x10] sm:$0xf]
        %v174 = vld [vmem:[%s168 + $0x14] sm:$0x1]
        %v175 = vld [vmem:[%s168 + $0x18] sm:$0xf]
        %v176 = vld [vmem:[%s168 + $0x1c] sm:$0xf]
        %v177 = vld [vmem:[%s168 + $0x20] sm:$0x1]
        %v178 = vld [vmem:[%s168 + $0x24] sm:$0xf]
        %v179 = vld [vmem:[%s168 + $0x28] sm:$0xf]
        %v180 = vld [vmem:[%s168 + $0x2c] sm:$0x1]
        %v181 = vunpack.c.l.bf16 %v169
        %v182 = vunpack.c.l.bf16 %v170
        %v183 = vunpack.c.l.bf16 %v171
        %v184 = vunpack.c.l.bf16 %v172
        %v185 = vunpack.c.l.bf16 %v173
        %v186 = vunpack.c.l.bf16 %v174
        %v187 = vunpack.c.l.bf16 %v175
        %v188 = vunpack.c.l.bf16 %v176
        %v189 = vunpack.c.l.bf16 %v177
        %v190 = vunpack.c.l.bf16 %v178
        %v191 = vunpack.c.l.bf16 %v179
        %v192 = vunpack.c.l.bf16 %v180
        %v193 = vld [vmem:[%s1] sm:$0x1]
        %v194 = vld [vmem:[%s1 + $0x1] sm:$0x1]
        %v195 = vld [vmem:[%s1 + $0x2] sm:$0x1]
        %v196 = vld [vmem:[%s1 + $0x3] sm:$0x1]
        %v201 = vlaneseq
        %v202 = vshrl.u32 %v201, 7
        %v203 = vsub.s32 0, %v202
        %v204 = vrot.slane %v193, %v203
        %v205 = vlaneseq
        %v206 = vshrl.u32 %v205, 7
        %v207 = vsub.s32 0, %v206
        %v208 = vrot.slane %v194, %v207
        %v209 = vlaneseq
        %v210 = vshrl.u32 %v209, 7
        %v211 = vsub.s32 0, %v210
        %v212 = vrot.slane %v195, %v211
        %v213 = vlaneseq
        %v214 = vshrl.u32 %v213, 7
        %v215 = vsub.s32 0, %v214
        %v216 = vrot.slane %v196, %v215
        %217 = vset.pattern.permute.xlu0 0
        %218 = vperm.xlu0 %217, %v204
        %v219 = vpop.permute.xlu0 %218
        %221 = vset.pattern.permute.xlu0 0
        %222 = vperm.xlu0 %221, %v208
        %v223 = vpop.permute.xlu0 %222
        %225 = vset.pattern.permute.xlu0 0
        %226 = vperm.xlu0 %225, %v212
        %v227 = vpop.permute.xlu0 %226
        %229 = vset.pattern.permute.xlu0 0
        %230 = vperm.xlu0 %229, %v216
        %v231 = vpop.permute.xlu0 %230
        %v233 = vmul.f32 %v219, %v181
        %v234 = vmul.f32 %v219, %v182
        %v235 = vmul.f32 %v223, %v184
        %v236 = vmul.f32 %v223, %v185
        %v237 = vmul.f32 %v227, %v187
        %v238 = vmul.f32 %v227, %v188
        %v239 = vmul.f32 %v231, %v190
        %v240 = vmul.f32 %v231, %v191
        %v241 = vadd.f32 %v233, 0.0
        %v242 = vadd.f32 %v234, 0.0
        %v243 = vadd.f32 %v235, 0.0
        %v244 = vadd.f32 %v236, 0.0
        %v245 = vadd.f32 %v237, 0.0
        %v246 = vadd.f32 %v238, 0.0
        %v247 = vadd.f32 %v239, 0.0
        %v248 = vadd.f32 %v240, 0.0
        %s249 = scalar_lea.vmem %s1, 4
        %v250 = vld [vmem:[%s249] sm:$0x1]
        %v251 = vld [vmem:[%s249 + $0x1] sm:$0x1]
        %v252 = vld [vmem:[%s249 + $0x2] sm:$0x1]
        %v253 = vld [vmem:[%s249 + $0x3] sm:$0x1]
        %v258 = vlaneseq
        %v259 = vshrl.u32 %v258, 7
        %v260 = vsub.s32 0, %v259
        %v261 = vrot.slane %v250, %v260
        %v262 = vlaneseq
        %v263 = vshrl.u32 %v262, 7
        %v264 = vsub.s32 0, %v263
        %v265 = vrot.slane %v251, %v264
        %v266 = vlaneseq
        %v267 = vshrl.u32 %v266, 7
        %v268 = vsub.s32 0, %v267
        %v269 = vrot.slane %v252, %v268
        %v270 = vlaneseq
        %v271 = vshrl.u32 %v270, 7
        %v272 = vsub.s32 0, %v271
        %v273 = vrot.slane %v253, %v272
        %274 = vset.pattern.permute.xlu0 0
        %275 = vperm.xlu0 %274, %v261
        %v276 = vpop.permute.xlu0 %275
        %278 = vset.pattern.permute.xlu0 0
        %279 = vperm.xlu0 %278, %v265
        %v280 = vpop.permute.xlu0 %279
        %282 = vset.pattern.permute.xlu0 0
        %283 = vperm.xlu0 %282, %v269
        %v284 = vpop.permute.xlu0 %283
        %286 = vset.pattern.permute.xlu0 0
        %287 = vperm.xlu0 %286, %v273
        %v288 = vpop.permute.xlu0 %287
        %v290 = vmul.f32 %v276, %v181
        %v291 = vmul.f32 %v276, %v182
        %v292 = vmul.f32 %v280, %v184
        %v293 = vmul.f32 %v280, %v185
        %v294 = vmul.f32 %v284, %v187
        %v295 = vmul.f32 %v284, %v188
        %v296 = vmul.f32 %v288, %v190
        %v297 = vmul.f32 %v288, %v191
        %306 = vrot.lane.b32.xlu0 %v290, 127
        %v307 = vpop.permute.xlu0 %306
        %308 = vrot.lane.b32.xlu0 %v291, 127
        %v309 = vpop.permute.xlu0 %308
        %310 = vrot.lane.b32.xlu0 %v292, 127
        %v311 = vpop.permute.xlu0 %310
        %312 = vrot.lane.b32.xlu0 %v293, 127
        %v313 = vpop.permute.xlu0 %312
        %314 = vrot.lane.b32.xlu0 %v294, 127
        %v315 = vpop.permute.xlu0 %314
        %316 = vrot.lane.b32.xlu0 %v295, 127
        %v317 = vpop.permute.xlu0 %316
        %318 = vrot.lane.b32.xlu0 %v296, 127
        %v319 = vpop.permute.xlu0 %318
        %320 = vrot.lane.b32.xlu0 %v297, 127
        %v321 = vpop.permute.xlu0 %320
        %v330 = vadd.f32 %v241, %v307
        %v331 = vadd.f32 %v242, %v309
        %v332 = vadd.f32 %v243, %v311
        %v333 = vadd.f32 %v244, %v313
        %v334 = vadd.f32 %v245, %v315
        %v335 = vadd.f32 %v246, %v317
        %v336 = vadd.f32 %v247, %v319
        %v337 = vadd.f32 %v248, %v321
        %s338 = scalar_lea.vmem %s1, 8
        %v339 = vld [vmem:[%s338] sm:$0x1]
        %v340 = vld [vmem:[%s338 + $0x1] sm:$0x1]
        %v341 = vld [vmem:[%s338 + $0x2] sm:$0x1]
        %v342 = vld [vmem:[%s338 + $0x3] sm:$0x1]
        %v347 = vlaneseq
        %v348 = vshrl.u32 %v347, 7
        %v349 = vsub.s32 0, %v348
        %v350 = vrot.slane %v339, %v349
        %v351 = vlaneseq
        %v352 = vshrl.u32 %v351, 7
        %v353 = vsub.s32 0, %v352
        %v354 = vrot.slane %v340, %v353
        %v355 = vlaneseq
        %v356 = vshrl.u32 %v355, 7
        %v357 = vsub.s32 0, %v356
        %v358 = vrot.slane %v341, %v357
        %v359 = vlaneseq
        %v360 = vshrl.u32 %v359, 7
        %v361 = vsub.s32 0, %v360
        %v362 = vrot.slane %v342, %v361
        %363 = vset.pattern.permute.xlu0 0
        %364 = vperm.xlu0 %363, %v350
        %v365 = vpop.permute.xlu0 %364
        %367 = vset.pattern.permute.xlu0 0
        %368 = vperm.xlu0 %367, %v354
        %v369 = vpop.permute.xlu0 %368
        %371 = vset.pattern.permute.xlu0 0
        %372 = vperm.xlu0 %371, %v358
        %v373 = vpop.permute.xlu0 %372
        %375 = vset.pattern.permute.xlu0 0
        %376 = vperm.xlu0 %375, %v362
        %v377 = vpop.permute.xlu0 %376
        %v379 = vmul.f32 %v365, %v181
        %v380 = vmul.f32 %v365, %v182
        %v381 = vmul.f32 %v369, %v184
        %v382 = vmul.f32 %v369, %v185
        %v383 = vmul.f32 %v373, %v187
        %v384 = vmul.f32 %v373, %v188
        %v385 = vmul.f32 %v377, %v190
        %v386 = vmul.f32 %v377, %v191
        %395 = vrot.lane.b32.xlu0 %v379, 126
        %v396 = vpop.permute.xlu0 %395
        %397 = vrot.lane.b32.xlu0 %v380, 126
        %v398 = vpop.permute.xlu0 %397
        %399 = vrot.lane.b32.xlu0 %v381, 126
        %v400 = vpop.permute.xlu0 %399
        %401 = vrot.lane.b32.xlu0 %v382, 126
        %v402 = vpop.permute.xlu0 %401
        %403 = vrot.lane.b32.xlu0 %v383, 126
        %v404 = vpop.permute.xlu0 %403
        %405 = vrot.lane.b32.xlu0 %v384, 126
        %v406 = vpop.permute.xlu0 %405
        %407 = vrot.lane.b32.xlu0 %v385, 126
        %v408 = vpop.permute.xlu0 %407
        %409 = vrot.lane.b32.xlu0 %v386, 126
        %v410 = vpop.permute.xlu0 %409
        %v419 = vadd.f32 %v330, %v396
        %v420 = vadd.f32 %v331, %v398
        %v421 = vadd.f32 %v332, %v400
        %v422 = vadd.f32 %v333, %v402
        %v423 = vadd.f32 %v334, %v404
        %v424 = vadd.f32 %v335, %v406
        %v425 = vadd.f32 %v336, %v408
        %v426 = vadd.f32 %v337, %v410
        %s427 = scalar_lea.vmem %s1, 12
        %v428 = vld [vmem:[%s427] sm:$0x1]
        %v429 = vld [vmem:[%s427 + $0x1] sm:$0x1]
        %v430 = vld [vmem:[%s427 + $0x2] sm:$0x1]
        %v431 = vld [vmem:[%s427 + $0x3] sm:$0x1]
        %v436 = vlaneseq
        %v437 = vshrl.u32 %v436, 7
        %v438 = vsub.s32 0, %v437
        %v439 = vrot.slane %v428, %v438
        %v440 = vlaneseq
        %v441 = vshrl.u32 %v440, 7
        %v442 = vsub.s32 0, %v441
        %v443 = vrot.slane %v429, %v442
        %v444 = vlaneseq
        %v445 = vshrl.u32 %v444, 7
        %v446 = vsub.s32 0, %v445
        %v447 = vrot.slane %v430, %v446
        %v448 = vlaneseq
        %v449 = vshrl.u32 %v448, 7
        %v450 = vsub.s32 0, %v449
        %v451 = vrot.slane %v431, %v450
        %452 = vset.pattern.permute.xlu0 0
        %453 = vperm.xlu0 %452, %v439
        %v454 = vpop.permute.xlu0 %453
        %456 = vset.pattern.permute.xlu0 0
        %457 = vperm.xlu0 %456, %v443
        %v458 = vpop.permute.xlu0 %457
        %460 = vset.pattern.permute.xlu0 0
        %461 = vperm.xlu0 %460, %v447
        %v462 = vpop.permute.xlu0 %461
        %464 = vset.pattern.permute.xlu0 0
        %465 = vperm.xlu0 %464, %v451
        %v466 = vpop.permute.xlu0 %465
        %v468 = vmul.f32 %v454, %v181
        %v469 = vmul.f32 %v454, %v182
        %v470 = vmul.f32 %v454, %v183
        %v471 = vmul.f32 %v458, %v184
        %v472 = vmul.f32 %v458, %v185
        %v473 = vmul.f32 %v458, %v186
        %v474 = vmul.f32 %v462, %v187
        %v475 = vmul.f32 %v462, %v188
        %v476 = vmul.f32 %v462, %v189
        %v477 = vmul.f32 %v466, %v190
        %v478 = vmul.f32 %v466, %v191
        %v479 = vmul.f32 %v466, %v192
        %vm492 = vcmask 1046528
        %v493 = vrot.slane %v468, 1
        %v494 = vrot.slane %v469, 1
        %v495 = vsel %vm492, %v493, %v494
        %v496 = vrot.slane %v470, 1
        %v497 = vsel %vm492, %v494, %v496
        %v498 = vrot.slane %v471, 1
        %v499 = vrot.slane %v472, 1
        %v500 = vsel %vm492, %v498, %v499
        %v501 = vrot.slane %v473, 1
        %v502 = vsel %vm492, %v499, %v501
        %v503 = vrot.slane %v474, 1
        %v504 = vrot.slane %v475, 1
        %v505 = vsel %vm492, %v503, %v504
        %v506 = vrot.slane %v476, 1
        %v507 = vsel %vm492, %v504, %v506
        %v508 = vrot.slane %v477, 1
        %v509 = vrot.slane %v478, 1
        %v510 = vsel %vm492, %v508, %v509
        %v511 = vrot.slane %v479, 1
        %v512 = vsel %vm492, %v509, %v511
        %v521 = vadd.f32 %v419, %v495
        %v522 = vadd.f32 %v420, %v497
        %v523 = vadd.f32 %v421, %v500
        %v524 = vadd.f32 %v422, %v502
        %v525 = vadd.f32 %v423, %v505
        %v526 = vadd.f32 %v424, %v507
        %v527 = vadd.f32 %v425, %v510
        %v528 = vadd.f32 %v426, %v512
        %s529 = scalar_lea.vmem %s1, 16
        %v530 = vld [vmem:[%s529] sm:$0x1]
        %v531 = vld [vmem:[%s529 + $0x1] sm:$0x1]
        %v532 = vld [vmem:[%s529 + $0x2] sm:$0x1]
        %v533 = vld [vmem:[%s529 + $0x3] sm:$0x1]
        %v538 = vlaneseq
        %v539 = vshrl.u32 %v538, 7
        %v540 = vsub.s32 0, %v539
        %v541 = vrot.slane %v530, %v540
        %v542 = vlaneseq
        %v543 = vshrl.u32 %v542, 7
        %v544 = vsub.s32 0, %v543
        %v545 = vrot.slane %v531, %v544
        %v546 = vlaneseq
        %v547 = vshrl.u32 %v546, 7
        %v548 = vsub.s32 0, %v547
        %v549 = vrot.slane %v532, %v548
        %v550 = vlaneseq
        %v551 = vshrl.u32 %v550, 7
        %v552 = vsub.s32 0, %v551
        %v553 = vrot.slane %v533, %v552
        %554 = vset.pattern.permute.xlu0 0
        %555 = vperm.xlu0 %554, %v541
        %v556 = vpop.permute.xlu0 %555
        %558 = vset.pattern.permute.xlu0 0
        %559 = vperm.xlu0 %558, %v545
        %v560 = vpop.permute.xlu0 %559
        %562 = vset.pattern.permute.xlu0 0
        %563 = vperm.xlu0 %562, %v549
        %v564 = vpop.permute.xlu0 %563
        %566 = vset.pattern.permute.xlu0 0
        %567 = vperm.xlu0 %566, %v553
        %v568 = vpop.permute.xlu0 %567
        %v570 = vmul.f32 %v556, %v181
        %v571 = vmul.f32 %v556, %v182
        %v572 = vmul.f32 %v556, %v183
        %v573 = vmul.f32 %v560, %v184
        %v574 = vmul.f32 %v560, %v185
        %v575 = vmul.f32 %v560, %v186
        %v576 = vmul.f32 %v564, %v187
        %v577 = vmul.f32 %v564, %v188
        %v578 = vmul.f32 %v564, %v189
        %v579 = vmul.f32 %v568, %v190
        %v580 = vmul.f32 %v568, %v191
        %v581 = vmul.f32 %v568, %v192
        %v594 = vrot.slane %v570, 1
        %v595 = vrot.slane %v571, 1
        %v596 = vsel %vm492, %v594, %v595
        %v597 = vrot.slane %v572, 1
        %v598 = vsel %vm492, %v595, %v597
        %v599 = vrot.slane %v573, 1
        %v600 = vrot.slane %v574, 1
        %v601 = vsel %vm492, %v599, %v600
        %v602 = vrot.slane %v575, 1
        %v603 = vsel %vm492, %v600, %v602
        %v604 = vrot.slane %v576, 1
        %v605 = vrot.slane %v577, 1
        %v606 = vsel %vm492, %v604, %v605
        %v607 = vrot.slane %v578, 1
        %v608 = vsel %vm492, %v605, %v607
        %v609 = vrot.slane %v579, 1
        %v610 = vrot.slane %v580, 1
        %v611 = vsel %vm492, %v609, %v610
        %v612 = vrot.slane %v581, 1
        %v613 = vsel %vm492, %v610, %v612
        %614 = vrot.lane.b32.xlu0 %v596, 127
        %v615 = vpop.permute.xlu0 %614
        %616 = vrot.lane.b32.xlu0 %v598, 127
        %v617 = vpop.permute.xlu0 %616
        %618 = vrot.lane.b32.xlu0 %v601, 127
        %v619 = vpop.permute.xlu0 %618
        %620 = vrot.lane.b32.xlu0 %v603, 127
        %v621 = vpop.permute.xlu0 %620
        %622 = vrot.lane.b32.xlu0 %v606, 127
        %v623 = vpop.permute.xlu0 %622
        %624 = vrot.lane.b32.xlu0 %v608, 127
        %v625 = vpop.permute.xlu0 %624
        %626 = vrot.lane.b32.xlu0 %v611, 127
        %v627 = vpop.permute.xlu0 %626
        %628 = vrot.lane.b32.xlu0 %v613, 127
        %v629 = vpop.permute.xlu0 %628
        %v638 = vadd.f32 %v521, %v615
        %v639 = vadd.f32 %v522, %v617
        %v640 = vadd.f32 %v523, %v619
        %v641 = vadd.f32 %v524, %v621
        %v642 = vadd.f32 %v525, %v623
        %v643 = vadd.f32 %v526, %v625
        %v644 = vadd.f32 %v527, %v627
        %v645 = vadd.f32 %v528, %v629
        %s646 = scalar_lea.vmem %s1, 20
        %v647 = vld [vmem:[%s646] sm:$0x1]
        %v648 = vld [vmem:[%s646 + $0x1] sm:$0x1]
        %v649 = vld [vmem:[%s646 + $0x2] sm:$0x1]
        %v650 = vld [vmem:[%s646 + $0x3] sm:$0x1]
        %v655 = vlaneseq
        %v656 = vshrl.u32 %v655, 7
        %v657 = vsub.s32 0, %v656
        %v658 = vrot.slane %v647, %v657
        %v659 = vlaneseq
        %v660 = vshrl.u32 %v659, 7
        %v661 = vsub.s32 0, %v660
        %v662 = vrot.slane %v648, %v661
        %v663 = vlaneseq
        %v664 = vshrl.u32 %v663, 7
        %v665 = vsub.s32 0, %v664
        %v666 = vrot.slane %v649, %v665
        %v667 = vlaneseq
        %v668 = vshrl.u32 %v667, 7
        %v669 = vsub.s32 0, %v668
        %v670 = vrot.slane %v650, %v669
        %671 = vset.pattern.permute.xlu0 0
        %672 = vperm.xlu0 %671, %v658
        %v673 = vpop.permute.xlu0 %672
        %675 = vset.pattern.permute.xlu0 0
        %676 = vperm.xlu0 %675, %v662
        %v677 = vpop.permute.xlu0 %676
        %679 = vset.pattern.permute.xlu0 0
        %680 = vperm.xlu0 %679, %v666
        %v681 = vpop.permute.xlu0 %680
        %683 = vset.pattern.permute.xlu0 0
        %684 = vperm.xlu0 %683, %v670
        %v685 = vpop.permute.xlu0 %684
        %v687 = vmul.f32 %v673, %v181
        %v688 = vmul.f32 %v673, %v182
        %v689 = vmul.f32 %v673, %v183
        %v690 = vmul.f32 %v677, %v184
        %v691 = vmul.f32 %v677, %v185
        %v692 = vmul.f32 %v677, %v186
        %v693 = vmul.f32 %v681, %v187
        %v694 = vmul.f32 %v681, %v188
        %v695 = vmul.f32 %v681, %v189
        %v696 = vmul.f32 %v685, %v190
        %v697 = vmul.f32 %v685, %v191
        %v698 = vmul.f32 %v685, %v192
        %v711 = vrot.slane %v687, 1
        %v712 = vrot.slane %v688, 1
        %v713 = vsel %vm492, %v711, %v712
        %v714 = vrot.slane %v689, 1
        %v715 = vsel %vm492, %v712, %v714
        %v716 = vrot.slane %v690, 1
        %v717 = vrot.slane %v691, 1
        %v718 = vsel %vm492, %v716, %v717
        %v719 = vrot.slane %v692, 1
        %v720 = vsel %vm492, %v717, %v719
        %v721 = vrot.slane %v693, 1
        %v722 = vrot.slane %v694, 1
        %v723 = vsel %vm492, %v721, %v722
        %v724 = vrot.slane %v695, 1
        %v725 = vsel %vm492, %v722, %v724
        %v726 = vrot.slane %v696, 1
        %v727 = vrot.slane %v697, 1
        %v728 = vsel %vm492, %v726, %v727
        %v729 = vrot.slane %v698, 1
        %v730 = vsel %vm492, %v727, %v729
        %731 = vrot.lane.b32.xlu0 %v713, 126
        %v732 = vpop.permute.xlu0 %731
        %733 = vrot.lane.b32.xlu0 %v715, 126
        %v734 = vpop.permute.xlu0 %733
        %735 = vrot.lane.b32.xlu0 %v718, 126
        %v736 = vpop.permute.xlu0 %735
        %737 = vrot.lane.b32.xlu0 %v720, 126
        %v738 = vpop.permute.xlu0 %737
        %739 = vrot.lane.b32.xlu0 %v723, 126
        %v740 = vpop.permute.xlu0 %739
        %741 = vrot.lane.b32.xlu0 %v725, 126
        %v742 = vpop.permute.xlu0 %741
        %743 = vrot.lane.b32.xlu0 %v728, 126
        %v744 = vpop.permute.xlu0 %743
        %745 = vrot.lane.b32.xlu0 %v730, 126
        %v746 = vpop.permute.xlu0 %745
        %v755 = vadd.f32 %v638, %v732
        %v756 = vadd.f32 %v639, %v734
        %v757 = vadd.f32 %v640, %v736
        %v758 = vadd.f32 %v641, %v738
        %v759 = vadd.f32 %v642, %v740
        %v760 = vadd.f32 %v643, %v742
        %v761 = vadd.f32 %v644, %v744
        %v762 = vadd.f32 %v645, %v746
        %s763 = scalar_lea.vmem %s1, 24
        %v764 = vld [vmem:[%s763] sm:$0x1]
        %v765 = vld [vmem:[%s763 + $0x1] sm:$0x1]
        %v766 = vld [vmem:[%s763 + $0x2] sm:$0x1]
        %v767 = vld [vmem:[%s763 + $0x3] sm:$0x1]
        %v772 = vlaneseq
        %v773 = vshrl.u32 %v772, 7
        %v774 = vsub.s32 0, %v773
        %v775 = vrot.slane %v764, %v774
        %v776 = vlaneseq
        %v777 = vshrl.u32 %v776, 7
        %v778 = vsub.s32 0, %v777
        %v779 = vrot.slane %v765, %v778
        %v780 = vlaneseq
        %v781 = vshrl.u32 %v780, 7
        %v782 = vsub.s32 0, %v781
        %v783 = vrot.slane %v766, %v782
        %v784 = vlaneseq
        %v785 = vshrl.u32 %v784, 7
        %v786 = vsub.s32 0, %v785
        %v787 = vrot.slane %v767, %v786
        %788 = vset.pattern.permute.xlu0 0
        %789 = vperm.xlu0 %788, %v775
        %v790 = vpop.permute.xlu0 %789
        %792 = vset.pattern.permute.xlu0 0
        %793 = vperm.xlu0 %792, %v779
        %v794 = vpop.permute.xlu0 %793
        %796 = vset.pattern.permute.xlu0 0
        %797 = vperm.xlu0 %796, %v783
        %v798 = vpop.permute.xlu0 %797
        %800 = vset.pattern.permute.xlu0 0
        %801 = vperm.xlu0 %800, %v787
        %v802 = vpop.permute.xlu0 %801
        %v804 = vmul.f32 %v790, %v181
        %v805 = vmul.f32 %v790, %v182
        %v806 = vmul.f32 %v790, %v183
        %v807 = vmul.f32 %v794, %v184
        %v808 = vmul.f32 %v794, %v185
        %v809 = vmul.f32 %v794, %v186
        %v810 = vmul.f32 %v798, %v187
        %v811 = vmul.f32 %v798, %v188
        %v812 = vmul.f32 %v798, %v189
        %v813 = vmul.f32 %v802, %v190
        %v814 = vmul.f32 %v802, %v191
        %v815 = vmul.f32 %v802, %v192
        %vm828 = vcmask 1045504
        %v829 = vrot.slane %v804, 2
        %v830 = vrot.slane %v805, 2
        %v831 = vsel %vm828, %v829, %v830
        %v832 = vrot.slane %v806, 2
        %v833 = vsel %vm828, %v830, %v832
        %v834 = vrot.slane %v807, 2
        %v835 = vrot.slane %v808, 2
        %v836 = vsel %vm828, %v834, %v835
        %v837 = vrot.slane %v809, 2
        %v838 = vsel %vm828, %v835, %v837
        %v839 = vrot.slane %v810, 2
        %v840 = vrot.slane %v811, 2
        %v841 = vsel %vm828, %v839, %v840
        %v842 = vrot.slane %v812, 2
        %v843 = vsel %vm828, %v840, %v842
        %v844 = vrot.slane %v813, 2
        %v845 = vrot.slane %v814, 2
        %v846 = vsel %vm828, %v844, %v845
        %v847 = vrot.slane %v815, 2
        %v848 = vsel %vm828, %v845, %v847
        %v857 = vadd.f32 %v755, %v831
        %v858 = vadd.f32 %v756, %v833
        %v859 = vadd.f32 %v757, %v836
        %v860 = vadd.f32 %v758, %v838
        %v861 = vadd.f32 %v759, %v841
        %v862 = vadd.f32 %v760, %v843
        %v863 = vadd.f32 %v761, %v846
        %v864 = vadd.f32 %v762, %v848
        %s865 = scalar_lea.vmem %s1, 28
        %v866 = vld [vmem:[%s865] sm:$0x1]
        %v867 = vld [vmem:[%s865 + $0x1] sm:$0x1]
        %v868 = vld [vmem:[%s865 + $0x2] sm:$0x1]
        %v869 = vld [vmem:[%s865 + $0x3] sm:$0x1]
        %v874 = vlaneseq
        %v875 = vshrl.u32 %v874, 7
        %v876 = vsub.s32 0, %v875
        %v877 = vrot.slane %v866, %v876
        %v878 = vlaneseq
        %v879 = vshrl.u32 %v878, 7
        %v880 = vsub.s32 0, %v879
        %v881 = vrot.slane %v867, %v880
        %v882 = vlaneseq
        %v883 = vshrl.u32 %v882, 7
        %v884 = vsub.s32 0, %v883
        %v885 = vrot.slane %v868, %v884
        %v886 = vlaneseq
        %v887 = vshrl.u32 %v886, 7
        %v888 = vsub.s32 0, %v887
        %v889 = vrot.slane %v869, %v888
        %890 = vset.pattern.permute.xlu0 0
        %891 = vperm.xlu0 %890, %v877
        %v892 = vpop.permute.xlu0 %891
        %894 = vset.pattern.permute.xlu0 0
        %895 = vperm.xlu0 %894, %v881
        %v896 = vpop.permute.xlu0 %895
        %898 = vset.pattern.permute.xlu0 0
        %899 = vperm.xlu0 %898, %v885
        %v900 = vpop.permute.xlu0 %899
        %902 = vset.pattern.permute.xlu0 0
        %903 = vperm.xlu0 %902, %v889
        %v904 = vpop.permute.xlu0 %903
        %v906 = vmul.f32 %v892, %v181
        %v907 = vmul.f32 %v892, %v182
        %v908 = vmul.f32 %v892, %v183
        %v909 = vmul.f32 %v896, %v184
        %v910 = vmul.f32 %v896, %v185
        %v911 = vmul.f32 %v896, %v186
        %v912 = vmul.f32 %v900, %v187
        %v913 = vmul.f32 %v900, %v188
        %v914 = vmul.f32 %v900, %v189
        %v915 = vmul.f32 %v904, %v190
        %v916 = vmul.f32 %v904, %v191
        %v917 = vmul.f32 %v904, %v192
        %v930 = vrot.slane %v906, 2
        %v931 = vrot.slane %v907, 2
        %v932 = vsel %vm828, %v930, %v931
        %v933 = vrot.slane %v908, 2
        %v934 = vsel %vm828, %v931, %v933
        %v935 = vrot.slane %v909, 2
        %v936 = vrot.slane %v910, 2
        %v937 = vsel %vm828, %v935, %v936
        %v938 = vrot.slane %v911, 2
        %v939 = vsel %vm828, %v936, %v938
        %v940 = vrot.slane %v912, 2
        %v941 = vrot.slane %v913, 2
        %v942 = vsel %vm828, %v940, %v941
        %v943 = vrot.slane %v914, 2
        %v944 = vsel %vm828, %v941, %v943
        %v945 = vrot.slane %v915, 2
        %v946 = vrot.slane %v916, 2
        %v947 = vsel %vm828, %v945, %v946
        %v948 = vrot.slane %v917, 2
        %v949 = vsel %vm828, %v946, %v948
        %950 = vrot.lane.b32.xlu0 %v932, 127
        %v951 = vpop.permute.xlu0 %950
        %952 = vrot.lane.b32.xlu0 %v934, 127
        %v953 = vpop.permute.xlu0 %952
        %954 = vrot.lane.b32.xlu0 %v937, 127
        %v955 = vpop.permute.xlu0 %954
        %956 = vrot.lane.b32.xlu0 %v939, 127
        %v957 = vpop.permute.xlu0 %956
        %958 = vrot.lane.b32.xlu0 %v942, 127
        %v959 = vpop.permute.xlu0 %958
        %960 = vrot.lane.b32.xlu0 %v944, 127
        %v961 = vpop.permute.xlu0 %960
        %962 = vrot.lane.b32.xlu0 %v947, 127
        %v963 = vpop.permute.xlu0 %962
        %964 = vrot.lane.b32.xlu0 %v949, 127
        %v965 = vpop.permute.xlu0 %964
        %v974 = vadd.f32 %v857, %v951
        %v975 = vadd.f32 %v858, %v953
        %v976 = vadd.f32 %v859, %v955
        %v977 = vadd.f32 %v860, %v957
        %v978 = vadd.f32 %v861, %v959
        %v979 = vadd.f32 %v862, %v961
        %v980 = vadd.f32 %v863, %v963
        %v981 = vadd.f32 %v864, %v965
        %s982 = scalar_lea.vmem %s1, 32
        %v983 = vld [vmem:[%s982] sm:$0x1]
        %v984 = vld [vmem:[%s982 + $0x1] sm:$0x1]
        %v985 = vld [vmem:[%s982 + $0x2] sm:$0x1]
        %v986 = vld [vmem:[%s982 + $0x3] sm:$0x1]
        %v991 = vlaneseq
        %v992 = vshrl.u32 %v991, 7
        %v993 = vsub.s32 0, %v992
        %v994 = vrot.slane %v983, %v993
        %v995 = vlaneseq
        %v996 = vshrl.u32 %v995, 7
        %v997 = vsub.s32 0, %v996
        %v998 = vrot.slane %v984, %v997
        %v999 = vlaneseq
        %v1000 = vshrl.u32 %v999, 7
        %v1001 = vsub.s32 0, %v1000
        %v1002 = vrot.slane %v985, %v1001
        %v1003 = vlaneseq
        %v1004 = vshrl.u32 %v1003, 7
        %v1005 = vsub.s32 0, %v1004
        %v1006 = vrot.slane %v986, %v1005
        %1007 = vset.pattern.permute.xlu0 0
        %1008 = vperm.xlu0 %1007, %v994
        %v1009 = vpop.permute.xlu0 %1008
        %1011 = vset.pattern.permute.xlu0 0
        %1012 = vperm.xlu0 %1011, %v998
        %v1013 = vpop.permute.xlu0 %1012
        %1015 = vset.pattern.permute.xlu0 0
        %1016 = vperm.xlu0 %1015, %v1002
        %v1017 = vpop.permute.xlu0 %1016
        %1019 = vset.pattern.permute.xlu0 0
        %1020 = vperm.xlu0 %1019, %v1006
        %v1021 = vpop.permute.xlu0 %1020
        %v1023 = vmul.f32 %v1009, %v181
        %v1024 = vmul.f32 %v1009, %v182
        %v1025 = vmul.f32 %v1009, %v183
        %v1026 = vmul.f32 %v1013, %v184
        %v1027 = vmul.f32 %v1013, %v185
        %v1028 = vmul.f32 %v1013, %v186
        %v1029 = vmul.f32 %v1017, %v187
        %v1030 = vmul.f32 %v1017, %v188
        %v1031 = vmul.f32 %v1017, %v189
        %v1032 = vmul.f32 %v1021, %v190
        %v1033 = vmul.f32 %v1021, %v191
        %v1034 = vmul.f32 %v1021, %v192
        %v1047 = vrot.slane %v1023, 2
        %v1048 = vrot.slane %v1024, 2
        %v1049 = vsel %vm828, %v1047, %v1048
        %v1050 = vrot.slane %v1025, 2
        %v1051 = vsel %vm828, %v1048, %v1050
        %v1052 = vrot.slane %v1026, 2
        %v1053 = vrot.slane %v1027, 2
        %v1054 = vsel %vm828, %v1052, %v1053
        %v1055 = vrot.slane %v1028, 2
        %v1056 = vsel %vm828, %v1053, %v1055
        %v1057 = vrot.slane %v1029, 2
        %v1058 = vrot.slane %v1030, 2
        %v1059 = vsel %vm828, %v1057, %v1058
        %v1060 = vrot.slane %v1031, 2
        %v1061 = vsel %vm828, %v1058, %v1060
        %v1062 = vrot.slane %v1032, 2
        %v1063 = vrot.slane %v1033, 2
        %v1064 = vsel %vm828, %v1062, %v1063
        %v1065 = vrot.slane %v1034, 2
        %v1066 = vsel %vm828, %v1063, %v1065
        %1067 = vrot.lane.b32.xlu0 %v1049, 126
        %v1068 = vpop.permute.xlu0 %1067
        %1069 = vrot.lane.b32.xlu0 %v1051, 126
        %v1070 = vpop.permute.xlu0 %1069
        %1071 = vrot.lane.b32.xlu0 %v1054, 126
        %v1072 = vpop.permute.xlu0 %1071
        %1073 = vrot.lane.b32.xlu0 %v1056, 126
        %v1074 = vpop.permute.xlu0 %1073
        %1075 = vrot.lane.b32.xlu0 %v1059, 126
        %v1076 = vpop.permute.xlu0 %1075
        %1077 = vrot.lane.b32.xlu0 %v1061, 126
        %v1078 = vpop.permute.xlu0 %1077
        %1079 = vrot.lane.b32.xlu0 %v1064, 126
        %v1080 = vpop.permute.xlu0 %1079
        %1081 = vrot.lane.b32.xlu0 %v1066, 126
        %v1082 = vpop.permute.xlu0 %1081
        %v1091 = vadd.f32 %v974, %v1068
        %v1092 = vadd.f32 %v975, %v1070
        %v1093 = vadd.f32 %v976, %v1072
        %v1094 = vadd.f32 %v977, %v1074
        %v1095 = vadd.f32 %v978, %v1076
        %v1096 = vadd.f32 %v979, %v1078
        %v1097 = vadd.f32 %v980, %v1080
        %v1098 = vadd.f32 %v981, %v1082
        %v1099 = vld [vmem:[%s2] sm:$0x1]
        %v1100 = vld [vmem:[%s2 + $0x1] sm:$0x1]
        %v1101 = vld [vmem:[%s2 + $0x2] sm:$0x1]
        %v1102 = vld [vmem:[%s2 + $0x3] sm:$0x1]
        %v1107 = vlaneseq
        %v1108 = vshrl.u32 %v1107, 7
        %v1109 = vsub.s32 0, %v1108
        %v1110 = vrot.slane %v1099, %v1109
        %v1111 = vlaneseq
        %v1112 = vshrl.u32 %v1111, 7
        %v1113 = vsub.s32 0, %v1112
        %v1114 = vrot.slane %v1100, %v1113
        %v1115 = vlaneseq
        %v1116 = vshrl.u32 %v1115, 7
        %v1117 = vsub.s32 0, %v1116
        %v1118 = vrot.slane %v1101, %v1117
        %v1119 = vlaneseq
        %v1120 = vshrl.u32 %v1119, 7
        %v1121 = vsub.s32 0, %v1120
        %v1122 = vrot.slane %v1102, %v1121
        %1123 = vset.pattern.permute.xlu0 0
        %1124 = vperm.xlu0 %1123, %v1110
        %v1125 = vpop.permute.xlu0 %1124
        %1127 = vset.pattern.permute.xlu0 0
        %1128 = vperm.xlu0 %1127, %v1114
        %v1129 = vpop.permute.xlu0 %1128
        %1131 = vset.pattern.permute.xlu0 0
        %1132 = vperm.xlu0 %1131, %v1118
        %v1133 = vpop.permute.xlu0 %1132
        %1135 = vset.pattern.permute.xlu0 0
        %1136 = vperm.xlu0 %1135, %v1122
        %v1137 = vpop.permute.xlu0 %1136
        %v1139 = vadd.f32 %v1091, %v1125
        %v1140 = vadd.f32 %v1092, %v1125
        %v1141 = vadd.f32 %v1093, %v1129
        %v1142 = vadd.f32 %v1094, %v1129
        %v1143 = vadd.f32 %v1095, %v1133
        %v1144 = vadd.f32 %v1096, %v1133
        %v1145 = vadd.f32 %v1097, %v1137
        %v1146 = vadd.f32 %v1098, %v1137
        %v1147 = vpack.c.bf16 %v1140, %v1139
        %v1148 = vpack.c.bf16 %v1142, %v1141
        %v1149 = vpack.c.bf16 %v1144, %v1143
        %v1150 = vpack.c.bf16 %v1146, %v1145
        %v1155 = vunpack.c.l.b16 %v1147
        %v1156 = vunpack.c.h.b16 %v1147
        %v1157 = vunpack.c.l.b16 %v1148
        %v1158 = vunpack.c.h.b16 %v1148
        %v1159 = vunpack.c.l.b16 %v1149
        %v1160 = vunpack.c.h.b16 %v1149
        %v1161 = vunpack.c.l.b16 %v1150
        %v1162 = vunpack.c.h.b16 %v1150
        %v1163 = vpack.c.b16 %v1155, %v1155
        %v1164 = vpack.c.b16 %v1156, %v1156
        %v1165 = vpack.c.b16 %v1157, %v1157
        %v1166 = vpack.c.b16 %v1158, %v1158
        %v1167 = vpack.c.b16 %v1159, %v1159
        %v1168 = vpack.c.b16 %v1160, %v1160
        %v1169 = vpack.c.b16 %v1161, %v1161
        %v1170 = vpack.c.b16 %v1162, %v1162
        %vm1179 = vcmask 125952
        %1180 = vst.msk [vmem:[%s163] sm:$0xf] %vm1179, %v1163
        %1181 = vst.msk [vmem:[%s163 + $0x4] sm:$0xf] %vm1179, %v1164
        %1182 = vst.msk [vmem:[%s163 + $0x8] sm:$0xf] %vm1179, %v1165
        %1183 = vst.msk [vmem:[%s163 + $0xc] sm:$0xf] %vm1179, %v1166
        %1184 = vst.msk [vmem:[%s163 + $0x10] sm:$0xf] %vm1179, %v1167
        %1185 = vst.msk [vmem:[%s163 + $0x14] sm:$0xf] %vm1179, %v1168
        %1186 = vst.msk [vmem:[%s163 + $0x18] sm:$0xf] %vm1179, %v1169
        %1187 = vst.msk [vmem:[%s163 + $0x1c] sm:$0xf] %vm1179, %v1170
        %s1188 = sand.u32 %s93, 1
        %s1189 = scalar_lea.sflag [#allocation3], %s1188
        %s1190 = sand.u32 %s93, 1
        %s1191 = smul.addr %s1190, 32
        %s1192 = scalar_lea.vmem [#allocation2], %s1191
        // Predicated region
        $region33: #{token_mixer_pallas.1} parent=31 // pred_check
          %p1193 = pneg %p103
        $region34: #{token_mixer_pallas.1} parent=31 // pred_check_branch
          %1195 = sbr.rel (%p1193) target = $region36
        $region35: #{token_mixer_pallas.1} parent=31 // pred_region
          %s1197 = ssub.s32 512, 512
          %1198 = vsyncadd %s1189, %s1197
          %s1199 = smul.addr %s17, 8
          %s1200 = smul.addr %s1199, 64
          %s1201 = scalar_lea.hbm %s3, %s1200
          %s1202 = sshll.u32 %s1192, 4
          %s1203 = int_to_ptr.vmem [resolvable:$true] %s1202
          %1208 = dma.vmem_to_hbm [thread:$0]  %s1203, 512, %s1201, %s1189, 64, 64, 4
        $region36: #{token_mixer_pallas.1} parent=31 // pred_fallthru
          _
      $region32: #{token_mixer_pallas.1} parent=5 // pred_fallthru
        _
      %p1209 = scmp.le.s32.totalorder 2, %s12
      // Predicated region
      $region37: #{token_mixer_pallas.1} parent=5 // pred_check
        %p1210 = pneg %p1209
      $region38: #{token_mixer_pallas.1} parent=5 // pred_check_branch
        %1212 = sbr.rel (%p1210) target = $region40
      $region39: #{token_mixer_pallas.1} parent=5 // pred_region
        %s1213 = ssub.s32 %s12, 2
        // Predicated region
        $region41: #{token_mixer_pallas.1} parent=39 // pred_check
          %p1214 = pneg %p109
        $region42: #{token_mixer_pallas.1} parent=39 // pred_check_branch
          %1216 = sbr.rel (%p1214) target = $region44
        $region43: #{token_mixer_pallas.1} parent=39 // pred_region
          %s1217 = sand.u32 %s94, 1
          %s1218 = scalar_lea.sflag [#allocation3], %s1217
          %s1219 = sand.u32 %s94, 1
          %s1220 = smul.addr %s1219, 32
          %s1221 = scalar_lea.vmem [#allocation2], %s1220
          %1222 = dma.done %s1218, 512
        $region44: #{token_mixer_pallas.1} parent=39 // pred_fallthru
          _
      $region40: #{token_mixer_pallas.1} parent=5 // pred_fallthru
        _
    $region6: #{token_mixer_pallas.1} parent=1 // loop_footer
      %s16 = sadd.s32 1, %s12
    $region7: #{token_mixer_pallas.1} parent=1 // loop_footer_branch
      %11 = sbr.rel target = $region3
    $region8: #{token_mixer_pallas.1} parent=1 // loop_exit
      _
    %1223 = vsyncpa [#allocation3], 1
    %s1224 = scalar_lea.sflag [#allocation3], 1
    %1225 = vsyncpa %s1224, 1

</llo_original>
